<compile_context>
chip_gen: v6e
topology: v6e:2x2x1
jax: 0.10.0
libtpu: 0.0.40
codegen_flags: <defaults>
</compile_context>

<pallas_src>
import functools
import math

import numpy as np
import jax
import jax.numpy as jnp
from jax import lax
from jax.experimental import pallas as pl
from jax.experimental.pallas import tpu as pltpu

_LN2 = math.log(2.0)


# ------------------------- Fused softmax + 4-way loss kernel -------------------------
def _fused_loss_kernel(x_ref, out_ref, *, B, C):
    """One grid step = one (predictions, labels) pair, flattened to N = B*C lanes.

    x_ref block (1, 3, N) f32:  row 0 = raw predictions (row-major flat),
                                row 1 = labels,
                                row 2 = constant DCG discount 1/log2(pos+2).
    out_ref (G, 1) f32 in SMEM: whole array resident; this step writes [g, 0].
    """
    g = pl.program_id(0)
    N = B * C
    nf = float(N)
    eps = 1e-8

    x = x_ref[0]                         # (3, N)
    p_in = x[0:1, :]                     # (1, N) raw predictions
    l = x[1:2, :]                        # (1, N) labels
    discount = x[2:3, :]                 # (1, N) constant-folded 1/log2(pos+2)

    # --- fused row softmax on the flat lane-dense layout ------------------------------
    # member[b, j] = 1 iff flat index j belongs to original row b (b*C <= j < (b+1)*C).
    bb = lax.broadcasted_iota(jnp.int32, (B, N), 0)
    jj = lax.broadcasted_iota(jnp.int32, (B, N), 1)
    lo = bb * C
    member = (jj >= lo) & (jj < lo + C)                                        # (B, N)

    g_max = jnp.max(jnp.where(member, p_in, -jnp.inf), axis=1, keepdims=True)  # (B, 1)
    e_max = jnp.sum(jnp.where(member, g_max, 0.0), axis=0, keepdims=True)      # (1, N)
    ex = jnp.exp(p_in - e_max)                                                 # (1, N)
    g_sum = jnp.sum(jnp.where(member, ex, 0.0), axis=1, keepdims=True)         # (B, 1)
    e_sum = jnp.sum(jnp.where(member, g_sum, 0.0), axis=0, keepdims=True)      # (1, N)
    # Exact divide (not approx rcp): probs feed the pairwise '<' rank comparisons and
    # an approximate-reciprocal error could flip a cross-row rank vs. the reference.
    p = ex / e_sum                                                             # (1, N)

    # --- (N, 1) columns for the pairwise masks ------------------------------------------
    # eye from one (N,1) + one (1,N) iota (no full (N,N) int32 iotas materialized).
    eye = (lax.broadcasted_iota(jnp.int32, (N, 1), 0)
           == lax.broadcasted_iota(jnp.int32, (1, N), 1))                      # (N, N) bool

    def as_col(row):  # (1, N) -> (N, 1) via select + lane reduction
        return jnp.sum(jnp.where(eye, row, 0.0), axis=1, keepdims=True)

    p_col = as_col(p)
    l_col = as_col(l)

    # --- ranks (lane-dense): rank[j] = #{i : x[i] < x[j]}  == argsort().argsort() ------
    p_rank = jnp.sum((p_col < p).astype(jnp.float32), axis=0, keepdims=True)   # (1, N)
    l_rank = jnp.sum((l_col < l).astype(jnp.float32), axis=0, keepdims=True)   # (1, N)

    # --- 1 - cosine similarity with folded denominator (one rsqrt on the EUP) ----------
    def one_minus_cos(a, b):
        num = jnp.sum(a * b)
        den2 = jnp.maximum(jnp.sum(a * a) * jnp.sum(b * b), eps * eps)
        return 1.0 - num * lax.rsqrt(den2)

    # --- spearman -----------------------------------------------------------------------
    spearman = one_minus_cos(p_rank, l_rank)

    # --- pearson: cosine of mean-centered vectors (the std factors cancel) --------------
    cp = p - jnp.sum(p) * (1.0 / nf)
    cl = l - jnp.sum(l) * (1.0 / nf)
    pearson = one_minus_cos(cp, cl)

    # --- ndcg: relevance = softmax(labels, flat); discount is a wrapper constant --------
    rel_e = jnp.exp(l - jnp.max(l))
    rel = rel_e * pl.reciprocal(jnp.sum(rel_e, keepdims=True), approx=True)    # (1, N)
    dcg = jnp.sum(rel * discount)
    # ideal DCG: softmax is permutation-equivariant, so index the discount by each
    # label's descending-order position: desc_pos = (N-1) - ascending_rank.
    desc_pos = (nf - 1.0) - l_rank
    ideal_discount = _LN2 / jnp.log(desc_pos + 2.0)
    ideal_dcg = jnp.sum(rel * ideal_discount)
    ndcg = 1.0 - dcg / ideal_dcg

    # --- rmse ----------------------------------------------------------------------------
    rmse = jnp.sqrt(jnp.sum((p - l) ** 2) * (1.0 / nf))

    out_ref[g, 0] = (spearman + pearson + ndcg + rmse) * 0.25


# --------------------------------------- Wrappers ---------------------------------------
def persuasive_loss_batched(predictions, labels):
    """predictions, labels: (G, B, C)  ->  (G,) losses (one PersuasiveLoss per pair)."""
    predictions = jnp.asarray(predictions, jnp.float32)
    labels = jnp.asarray(labels, jnp.float32)
    G, B, C = predictions.shape
    N = B * C

    # DCG discount is static: constant-folded here with numpy and shipped inside the
    # same single stacked DMA tile as the data (zero in-kernel iota/log/div for it).
    disc = (1.0 / np.log2(np.arange(2, N + 2, dtype=np.float64))).astype(np.float32)
    disc = jnp.broadcast_to(jnp.asarray(disc).reshape(1, 1, N), (G, 1, N))

    x = jnp.concatenate(
        [predictions.reshape(G, 1, N), labels.reshape(G, 1, N), disc], axis=1)  # (G, 3, N)

    # Explicit scoped-VMEM budget: a handful of (N, N) f32 temporaries live at once.
    # Re-derive before scaling N (v5e scoped default 16 MiB, v7x physical VMEM 64 MiB).
    vmem_limit = int(min(48 * 1024 * 1024, max(16 * 1024 * 1024, 10 * N * N * 4)))

    kernel = functools.partial(_fused_loss_kernel, B=B, C=C)
    out = pl.pallas_call(
        kernel,
        out_shape=jax.ShapeDtypeStruct((G, 1), jnp.float32),
        grid=(G,),
        in_specs=[pl.BlockSpec((1, 3, N), lambda g: (g, 0, 0))],
        out_specs=pl.BlockSpec(memory_space=pltpu.MemorySpace.SMEM),
        compiler_params=pltpu.CompilerParams(
            dimension_semantics=("arbitrary",),
            vmem_limit_bytes=vmem_limit,
        ),
    )(x)
    return out[:, 0]


def persuasive_loss(predictions, labels):
    """Module-equivalent forward: (B, C) predictions/labels -> scalar loss."""
    return persuasive_loss_batched(predictions[None], labels[None])[0]


# ------------------------------ Pure-JAX reference (torch spec) -------------------------
def _reference_loss(predictions, labels):
    probs = jax.nn.softmax(predictions.astype(jnp.float32), axis=-1)
    p = probs.reshape(-1)
    l = labels.astype(jnp.float32).reshape(-1)
    n = p.shape[0]

    def ranks(v):
        return jnp.argsort(jnp.argsort(v)).astype(jnp.float32)

    def cos(a, b):
        return jnp.dot(a, b) / jnp.maximum(
            jnp.linalg.norm(a) * jnp.linalg.norm(b), 1e-8)

    spearman = 1.0 - cos(ranks(p), ranks(l))
    a = (p - p.mean()) / jnp.std(p, ddof=1)
    b = (l - l.mean()) / jnp.std(l, ddof=1)
    pearson = 1.0 - cos(a, b)
    rel = jax.nn.softmax(l)
    disc = 1.0 / jnp.log2(jnp.arange(2, n + 2, dtype=jnp.float32))
    dcg = jnp.sum(rel * disc)
    ideal_rel = jax.nn.softmax(jnp.sort(l)[::-1])
    ideal_dcg = jnp.sum(ideal_rel * disc)
    ndcg = 1.0 - dcg / ideal_dcg
    rmse = jnp.sqrt(jnp.mean((probs - labels.astype(jnp.float32)) ** 2))
    return (spearman + pearson + ndcg + rmse) / 4.0


if __name__ == "__main__":
    key = jax.random.PRNGKey(0)
    k1, k2 = jax.random.split(key)
    # Small shapes consistent with the module: (batch=2, classes=16) scores + labels.
    predictions = jax.random.normal(k1, (2, 16), dtype=jnp.float32)
    labels = jax.random.uniform(k2, (2, 16), dtype=jnp.float32)

    loss = persuasive_loss(predictions, labels)
    jax.block_until_ready(loss)
    ref = _reference_loss(predictions, labels)
    assert bool(jnp.isfinite(loss)), "non-finite loss"
    assert abs(float(loss) - float(ref)) < 1e-3, (float(loss), float(ref))

    # Batched path: several (predictions, labels) pairs through one pallas_call grid.
    G = 4
    kp, kl = jax.random.split(jax.random.PRNGKey(1))
    preds_b = jax.random.normal(kp, (G, 2, 16), dtype=jnp.float32)
    labels_b = jax.random.uniform(kl, (G, 2, 16), dtype=jnp.float32)
    losses = persuasive_loss_batched(preds_b, labels_b)
    jax.block_until_ready(losses)
    for i in range(G):
        ref_i = _reference_loss(preds_b[i], labels_b[i])
        assert abs(float(losses[i]) - float(ref_i)) < 1e-3, (
            i, float(losses[i]), float(ref_i))

    print("KERNEL_OK")
</pallas_src>

<mosaic_0001>
module attributes {stable_mosaic.version = 11 : i64} {
  func.func @_fused_loss_kernel(%arg0: i32, %arg1: memref<1x3x32xf32, #tpu.memory_space<vmem>>, %arg2: memref<1x1xf32, #tpu.memory_space<smem>>) attributes {dimension_semantics = [#tpu.dimension_semantics<arbitrary>], iteration_bounds = array<i64: 1>, scalar_prefetch = 0 : i64, scratch_operands = 0 : i64, tpu.core_type = #tpu.core_type<tc>, window_params = [{transform_indices = @transform_0, window_bounds = array<i64: 1, 3, 32>}, {transform_indices = @transform_1, window_bounds = array<i64: 1, 1>}]} {
    %c0 = arith.constant 0 : index
    %c0_0 = arith.constant 0 : index
    %c0_1 = arith.constant 0 : index
    %0 = vector.load %arg1[%c0, %c0_0, %c0_1] : memref<1x3x32xf32, #tpu.memory_space<vmem>>, vector<1x3x32xf32>
    %1 = vector.shape_cast %0 : vector<1x3x32xf32> to vector<3x32xf32>
    %2 = vector.extract_strided_slice %1 {offsets = [0, 0], sizes = [1, 32], strides = [1, 1]} : vector<3x32xf32> to vector<1x32xf32>
    %3 = vector.extract_strided_slice %1 {offsets = [1, 0], sizes = [1, 32], strides = [1, 1]} : vector<3x32xf32> to vector<1x32xf32>
    %4 = vector.extract_strided_slice %1 {offsets = [2, 0], sizes = [1, 32], strides = [1, 1]} : vector<3x32xf32> to vector<1x32xf32>
    %5 = tpu.iota {dimensions = array<i32: 0>} : vector<2x32xi32>
    %6 = tpu.iota {dimensions = array<i32: 1>} : vector<2x32xi32>
    %c16_i32 = arith.constant 16 : i32
    %7 = vector.broadcast %c16_i32 : i32 to vector<2x32xi32>
    %8 = arith.muli %5, %7 : vector<2x32xi32>
    %9 = arith.cmpi sge, %6, %8 : vector<2x32xi32>
    %c16_i32_2 = arith.constant 16 : i32
    %10 = vector.broadcast %c16_i32_2 : i32 to vector<2x32xi32>
    %11 = arith.addi %8, %10 : vector<2x32xi32>
    %12 = arith.cmpi slt, %6, %11 : vector<2x32xi32>
    %13 = arith.andi %9, %12 : vector<2x32xi1>
    %cst = arith.constant 0xFF800000 : f32
    %14 = vector.shape_cast %2 : vector<1x32xf32> to vector<1x32xf32>
    %15 = vector.broadcast %14 : vector<1x32xf32> to vector<2x32xf32>
    %16 = vector.broadcast %cst : f32 to vector<2x32xf32>
    %17 = arith.select %13, %15, %16 : vector<2x32xi1>, vector<2x32xf32>
    %cst_3 = arith.constant dense<0xFF800000> : vector<2xf32>
    %18 = vector.multi_reduction <maximumf>, %17, %cst_3 [1] : vector<2x32xf32> to vector<2xf32>
    %19 = vector.shape_cast %18 : vector<2xf32> to vector<2x1xf32>
    %cst_4 = arith.constant 0.000000e+00 : f32
    %20 = vector.shape_cast %19 : vector<2x1xf32> to vector<2x1xf32>
    %21 = vector.broadcast %20 : vector<2x1xf32> to vector<2x32xf32>
    %22 = vector.broadcast %cst_4 : f32 to vector<2x32xf32>
    %23 = arith.select %13, %21, %22 : vector<2x32xi1>, vector<2x32xf32>
    %cst_5 = arith.constant dense<0.000000e+00> : vector<32xf32>
    %24 = vector.multi_reduction <add>, %23, %cst_5 [0] : vector<2x32xf32> to vector<32xf32>
    %25 = vector.shape_cast %24 : vector<32xf32> to vector<1x32xf32>
    %26 = arith.subf %2, %25 : vector<1x32xf32>
    %27 = math.exp %26 : vector<1x32xf32>
    %cst_6 = arith.constant 0.000000e+00 : f32
    %28 = vector.shape_cast %27 : vector<1x32xf32> to vector<1x32xf32>
    %29 = vector.broadcast %28 : vector<1x32xf32> to vector<2x32xf32>
    %30 = vector.broadcast %cst_6 : f32 to vector<2x32xf32>
    %31 = arith.select %13, %29, %30 : vector<2x32xi1>, vector<2x32xf32>
    %cst_7 = arith.constant dense<0.000000e+00> : vector<2xf32>
    %32 = vector.multi_reduction <add>, %31, %cst_7 [1] : vector<2x32xf32> to vector<2xf32>
    %33 = vector.shape_cast %32 : vector<2xf32> to vector<2x1xf32>
    %cst_8 = arith.constant 0.000000e+00 : f32
    %34 = vector.shape_cast %33 : vector<2x1xf32> to vector<2x1xf32>
    %35 = vector.broadcast %34 : vector<2x1xf32> to vector<2x32xf32>
    %36 = vector.broadcast %cst_8 : f32 to vector<2x32xf32>
    %37 = arith.select %13, %35, %36 : vector<2x32xi1>, vector<2x32xf32>
    %cst_9 = arith.constant dense<0.000000e+00> : vector<32xf32>
    %38 = vector.multi_reduction <add>, %37, %cst_9 [0] : vector<2x32xf32> to vector<32xf32>
    %39 = vector.shape_cast %38 : vector<32xf32> to vector<1x32xf32>
    %40 = arith.divf %27, %39 : vector<1x32xf32>
    %41 = tpu.iota {dimensions = array<i32: 0>} : vector<32x1xi32>
    %42 = tpu.iota {dimensions = array<i32: 1>} : vector<1x32xi32>
    %43 = vector.broadcast %41 : vector<32x1xi32> to vector<32x32xi32>
    %44 = vector.broadcast %42 : vector<1x32xi32> to vector<32x32xi32>
    %45 = arith.cmpi eq, %43, %44 : vector<32x32xi32>
    %cst_10 = arith.constant 0.000000e+00 : f32
    %46 = vector.shape_cast %40 : vector<1x32xf32> to vector<1x32xf32>
    %47 = vector.broadcast %46 : vector<1x32xf32> to vector<32x32xf32>
    %48 = vector.broadcast %cst_10 : f32 to vector<32x32xf32>
    %49 = arith.select %45, %47, %48 : vector<32x32xi1>, vector<32x32xf32>
    %cst_11 = arith.constant dense<0.000000e+00> : vector<32xf32>
    %50 = vector.multi_reduction <add>, %49, %cst_11 [1] : vector<32x32xf32> to vector<32xf32>
    %51 = vector.shape_cast %50 : vector<32xf32> to vector<32x1xf32>
    %cst_12 = arith.constant 0.000000e+00 : f32
    %52 = vector.shape_cast %3 : vector<1x32xf32> to vector<1x32xf32>
    %53 = vector.broadcast %52 : vector<1x32xf32> to vector<32x32xf32>
    %54 = vector.broadcast %cst_12 : f32 to vector<32x32xf32>
    %55 = arith.select %45, %53, %54 : vector<32x32xi1>, vector<32x32xf32>
    %cst_13 = arith.constant dense<0.000000e+00> : vector<32xf32>
    %56 = vector.multi_reduction <add>, %55, %cst_13 [1] : vector<32x32xf32> to vector<32xf32>
    %57 = vector.shape_cast %56 : vector<32xf32> to vector<32x1xf32>
    %58 = vector.broadcast %51 : vector<32x1xf32> to vector<32x32xf32>
    %59 = vector.broadcast %40 : vector<1x32xf32> to vector<32x32xf32>
    %60 = arith.cmpf olt, %58, %59 : vector<32x32xf32>
    %61 = arith.extui %60 : vector<32x32xi1> to vector<32x32xi32>
    %62 = arith.sitofp %61 : vector<32x32xi32> to vector<32x32xf32>
    %cst_14 = arith.constant dense<0.000000e+00> : vector<32xf32>
    %63 = vector.multi_reduction <add>, %62, %cst_14 [0] : vector<32x32xf32> to vector<32xf32>
    %64 = vector.shape_cast %63 : vector<32xf32> to vector<1x32xf32>
    %65 = vector.broadcast %57 : vector<32x1xf32> to vector<32x32xf32>
    %66 = vector.broadcast %3 : vector<1x32xf32> to vector<32x32xf32>
    %67 = arith.cmpf olt, %65, %66 : vector<32x32xf32>
    %68 = arith.extui %67 : vector<32x32xi1> to vector<32x32xi32>
    %69 = arith.sitofp %68 : vector<32x32xi32> to vector<32x32xf32>
    %cst_15 = arith.constant dense<0.000000e+00> : vector<32xf32>
    %70 = vector.multi_reduction <add>, %69, %cst_15 [0] : vector<32x32xf32> to vector<32xf32>
    %71 = vector.shape_cast %70 : vector<32xf32> to vector<1x32xf32>
    %72 = arith.mulf %64, %71 : vector<1x32xf32>
    %73 = vector.shape_cast %72 : vector<1x32xf32> to vector<1x1x32xf32>
    %cst_16 = arith.constant dense<0.000000e+00> : vector<1xf32>
    %74 = vector.multi_reduction <add>, %73, %cst_16 [1, 2] : vector<1x1x32xf32> to vector<1xf32>
    %75 = vector.shape_cast %74 : vector<1xf32> to vector<1x1x1xf32>
    %76 = vector.extract %75[0, 0, 0] : f32 from vector<1x1x1xf32>
    %77 = arith.mulf %64, %64 : vector<1x32xf32>
    %78 = vector.shape_cast %77 : vector<1x32xf32> to vector<1x1x32xf32>
    %cst_17 = arith.constant dense<0.000000e+00> : vector<1xf32>
    %79 = vector.multi_reduction <add>, %78, %cst_17 [1, 2] : vector<1x1x32xf32> to vector<1xf32>
    %80 = vector.shape_cast %79 : vector<1xf32> to vector<1x1x1xf32>
    %81 = vector.extract %80[0, 0, 0] : f32 from vector<1x1x1xf32>
    %82 = arith.mulf %71, %71 : vector<1x32xf32>
    %83 = vector.shape_cast %82 : vector<1x32xf32> to vector<1x1x32xf32>
    %cst_18 = arith.constant dense<0.000000e+00> : vector<1xf32>
    %84 = vector.multi_reduction <add>, %83, %cst_18 [1, 2] : vector<1x1x32xf32> to vector<1xf32>
    %85 = vector.shape_cast %84 : vector<1xf32> to vector<1x1x1xf32>
    %86 = vector.extract %85[0, 0, 0] : f32 from vector<1x1x1xf32>
    %87 = arith.mulf %81, %86 : f32
    %cst_19 = arith.constant 1.000000e-16 : f32
    %88 = arith.maximumf %87, %cst_19 : f32
    %89 = math.rsqrt %88 : f32
    %90 = arith.mulf %76, %89 : f32
    %cst_20 = arith.constant 1.000000e+00 : f32
    %91 = arith.subf %cst_20, %90 : f32
    %92 = vector.shape_cast %40 : vector<1x32xf32> to vector<1x1x32xf32>
    %cst_21 = arith.constant dense<0.000000e+00> : vector<1xf32>
    %93 = vector.multi_reduction <add>, %92, %cst_21 [1, 2] : vector<1x1x32xf32> to vector<1xf32>
    %94 = vector.shape_cast %93 : vector<1xf32> to vector<1x1x1xf32>
    %95 = vector.extract %94[0, 0, 0] : f32 from vector<1x1x1xf32>
    %cst_22 = arith.constant 3.125000e-02 : f32
    %96 = arith.mulf %95, %cst_22 : f32
    %97 = vector.broadcast %96 : f32 to vector<1x32xf32>
    %98 = arith.subf %40, %97 : vector<1x32xf32>
    %99 = vector.shape_cast %3 : vector<1x32xf32> to vector<1x1x32xf32>
    %cst_23 = arith.constant dense<0.000000e+00> : vector<1xf32>
    %100 = vector.multi_reduction <add>, %99, %cst_23 [1, 2] : vector<1x1x32xf32> to vector<1xf32>
    %101 = vector.shape_cast %100 : vector<1xf32> to vector<1x1x1xf32>
    %102 = vector.extract %101[0, 0, 0] : f32 from vector<1x1x1xf32>
    %cst_24 = arith.constant 3.125000e-02 : f32
    %103 = arith.mulf %102, %cst_24 : f32
    %104 = vector.broadcast %103 : f32 to vector<1x32xf32>
    %105 = arith.subf %3, %104 : vector<1x32xf32>
    %106 = arith.mulf %98, %105 : vector<1x32xf32>
    %107 = vector.shape_cast %106 : vector<1x32xf32> to vector<1x1x32xf32>
    %cst_25 = arith.constant dense<0.000000e+00> : vector<1xf32>
    %108 = vector.multi_reduction <add>, %107, %cst_25 [1, 2] : vector<1x1x32xf32> to vector<1xf32>
    %109 = vector.shape_cast %108 : vector<1xf32> to vector<1x1x1xf32>
    %110 = vector.extract %109[0, 0, 0] : f32 from vector<1x1x1xf32>
    %111 = arith.mulf %98, %98 : vector<1x32xf32>
    %112 = vector.shape_cast %111 : vector<1x32xf32> to vector<1x1x32xf32>
    %cst_26 = arith.constant dense<0.000000e+00> : vector<1xf32>
    %113 = vector.multi_reduction <add>, %112, %cst_26 [1, 2] : vector<1x1x32xf32> to vector<1xf32>
    %114 = vector.shape_cast %113 : vector<1xf32> to vector<1x1x1xf32>
    %115 = vector.extract %114[0, 0, 0] : f32 from vector<1x1x1xf32>
    %116 = arith.mulf %105, %105 : vector<1x32xf32>
    %117 = vector.shape_cast %116 : vector<1x32xf32> to vector<1x1x32xf32>
    %cst_27 = arith.constant dense<0.000000e+00> : vector<1xf32>
    %118 = vector.multi_reduction <add>, %117, %cst_27 [1, 2] : vector<1x1x32xf32> to vector<1xf32>
    %119 = vector.shape_cast %118 : vector<1xf32> to vector<1x1x1xf32>
    %120 = vector.extract %119[0, 0, 0] : f32 from vector<1x1x1xf32>
    %121 = arith.mulf %115, %120 : f32
    %cst_28 = arith.constant 1.000000e-16 : f32
    %122 = arith.maximumf %121, %cst_28 : f32
    %123 = math.rsqrt %122 : f32
    %124 = arith.mulf %110, %123 : f32
    %cst_29 = arith.constant 1.000000e+00 : f32
    %125 = arith.subf %cst_29, %124 : f32
    %126 = vector.shape_cast %3 : vector<1x32xf32> to vector<1x1x32xf32>
    %cst_30 = arith.constant dense<0xFF800000> : vector<1xf32>
    %127 = vector.multi_reduction <maximumf>, %126, %cst_30 [1, 2] : vector<1x1x32xf32> to vector<1xf32>
    %128 = vector.shape_cast %127 : vector<1xf32> to vector<1x1x1xf32>
    %129 = vector.extract %128[0, 0, 0] : f32 from vector<1x1x1xf32>
    %130 = vector.broadcast %129 : f32 to vector<1x32xf32>
    %131 = arith.subf %3, %130 : vector<1x32xf32>
    %132 = math.exp %131 : vector<1x32xf32>
    %133 = vector.shape_cast %132 : vector<1x32xf32> to vector<1x1x32xf32>
    %cst_31 = arith.constant dense<0.000000e+00> : vector<1xf32>
    %134 = vector.multi_reduction <add>, %133, %cst_31 [1, 2] : vector<1x1x32xf32> to vector<1xf32>
    %135 = vector.shape_cast %134 : vector<1xf32> to vector<1x1x1xf32>
    %136 = vector.extract %135[0, 0, 0] : f32 from vector<1x1x1xf32>
    %137 = vector.broadcast %136 : f32 to vector<1x1xf32>
    %138 = tpu.reciprocal %137 {approx = true} : vector<1x1xf32> -> vector<1x1xf32>
    %139 = vector.broadcast %138 : vector<1x1xf32> to vector<1x32xf32>
    %140 = arith.mulf %132, %139 : vector<1x32xf32>
    %141 = arith.mulf %140, %4 : vector<1x32xf32>
    %142 = vector.shape_cast %141 : vector<1x32xf32> to vector<1x1x32xf32>
    %cst_32 = arith.constant dense<0.000000e+00> : vector<1xf32>
    %143 = vector.multi_reduction <add>, %142, %cst_32 [1, 2] : vector<1x1x32xf32> to vector<1xf32>
    %144 = vector.shape_cast %143 : vector<1xf32> to vector<1x1x1xf32>
    %145 = vector.extract %144[0, 0, 0] : f32 from vector<1x1x1xf32>
    %cst_33 = arith.constant 3.100000e+01 : f32
    %146 = vector.broadcast %cst_33 : f32 to vector<1x32xf32>
    %147 = arith.subf %146, %71 : vector<1x32xf32>
    %cst_34 = arith.constant 2.000000e+00 : f32
    %148 = vector.broadcast %cst_34 : f32 to vector<1x32xf32>
    %149 = arith.addf %147, %148 : vector<1x32xf32>
    %150 = math.log %149 : vector<1x32xf32>
    %cst_35 = arith.constant 0.693147182 : f32
    %151 = vector.broadcast %cst_35 : f32 to vector<1x32xf32>
    %152 = arith.divf %151, %150 : vector<1x32xf32>
    %153 = arith.mulf %140, %152 : vector<1x32xf32>
    %154 = vector.shape_cast %153 : vector<1x32xf32> to vector<1x1x32xf32>
    %cst_36 = arith.constant dense<0.000000e+00> : vector<1xf32>
    %155 = vector.multi_reduction <add>, %154, %cst_36 [1, 2] : vector<1x1x32xf32> to vector<1xf32>
    %156 = vector.shape_cast %155 : vector<1xf32> to vector<1x1x1xf32>
    %157 = vector.extract %156[0, 0, 0] : f32 from vector<1x1x1xf32>
    %158 = arith.divf %145, %157 : f32
    %cst_37 = arith.constant 1.000000e+00 : f32
    %159 = arith.subf %cst_37, %158 : f32
    %160 = arith.subf %40, %3 : vector<1x32xf32>
    %161 = arith.mulf %160, %160 : vector<1x32xf32>
    %162 = vector.shape_cast %161 : vector<1x32xf32> to vector<1x1x32xf32>
    %cst_38 = arith.constant dense<0.000000e+00> : vector<1xf32>
    %163 = vector.multi_reduction <add>, %162, %cst_38 [1, 2] : vector<1x1x32xf32> to vector<1xf32>
    %164 = vector.shape_cast %163 : vector<1xf32> to vector<1x1x1xf32>
    %165 = vector.extract %164[0, 0, 0] : f32 from vector<1x1x1xf32>
    %cst_39 = arith.constant 3.125000e-02 : f32
    %166 = arith.mulf %165, %cst_39 : f32
    %167 = math.sqrt %166 : f32
    %168 = arith.addf %91, %125 : f32
    %169 = arith.addf %168, %159 : f32
    %170 = arith.addf %169, %167 : f32
    %cst_40 = arith.constant 2.500000e-01 : f32
    %171 = arith.mulf %170, %cst_40 : f32
    %172 = arith.index_cast %arg0 : i32 to index
    %c0_41 = arith.constant 0 : index
    %173 = memref.load %arg2[%172, %c0_41] : memref<1x1xf32, #tpu.memory_space<smem>>
    memref.store %171, %arg2[%172, %c0_41] : memref<1x1xf32, #tpu.memory_space<smem>>
    return
  }
  func.func @transform_0(%arg0: i32) -> (i32, i32, i32) {
    %c0_i32 = arith.constant 0 : i32
    %c0_i32_0 = arith.constant 0 : i32
    %c0_i32_1 = arith.constant 0 : i32
    return %arg0, %c0_i32, %c0_i32_0 : i32, i32, i32
  }
  func.func @transform_1(%arg0: i32) -> (i32, i32) {
    %c0_i32 = arith.constant 0 : i32
    %c0_i32_0 = arith.constant 0 : i32
    %c0_i32_1 = arith.constant 0 : i32
    return %c0_i32, %c0_i32_0 : i32, i32
  }
}

</mosaic_0001>

<llo_original>
// kernel: tpu_custom_call.1
$region0: #{tpu_custom_call.1}
  #allocation0 [shape = 'u32[]', space=smem, size = 0x4, offset = 0x4, fixed_abs, tag = 'smem constant byte address 0x4 - core index']
  #allocation1 [shape = 'u32[144,128]{1,0:T(1,128)}', space=vmem, size = 0x12000, scoped, tag = 'internal scratch']
  %s0 = inlined_call_operand.vmem [shape: f32[1,3,32], index: 0, kind: input, shape index: {}]
  %s1 = inlined_call_operand.hbm [shape: f32[1,1], index: 1, kind: output, shape index: {}]
  %s2 = sld [smem:[#allocation0]]
  $region14: #{tpu_custom_call.1} parent=0
    _
  %s4 = ssub.s32 1, %s2
  %s5 = scalar_select 0, %s4, %s2
  $region1: #{tpu_custom_call.1} parent=0
    #allocation2 [shape = 'u8[512]{0}', space=smem, size = 0x200, scoped, tag = 'output window, operand 0, single buffered']
    #allocation3 [shape = 's32[1]{0}', space=sflag, size = 0x4, scoped, tag = 'scoped memory for tpu_custom_call.1']
    %6 = vsyncpa [#allocation3], 0
    // Predicated region
    $region2: #{tpu_custom_call.1} parent=1 // pred_check
      _
    $region3: #{tpu_custom_call.1} parent=1 // pred_check_branch
      %8 = sbr.rel (0) target = $region5
    $region4: #{tpu_custom_call.1} parent=1 // pred_region
      _
    $region5: #{tpu_custom_call.1} parent=1 // pred_fallthru
      _
    %v9 = vld [vmem:[%s0] sm:$0x7]
    %v10 = vlaneseq
    %v11 = vshrl.u32 %v10, 7
    %v12 = vlaneseq
    %v13 = vand.u32 %v12, 127
    %v14 = vmul.u32 %v11, 16
    %vm15 = vcmp.ge.s32.totalorder %v13, %v14
    %v16 = vadd.s32 %v14, 16
    %vm17 = vcmp.lt.s32.totalorder %v13, %v16
    %vm18 = vmand %vm15, %vm17
    %v19 = vlaneseq
    %v20 = vshrl.u32 %v19, 7
    %v21 = vsub.s32 0, %v20
    %v22 = vrot.slane %v9, %v21
    %v23 = vsel %vm18, %v22, -inf
    %vm24 = vcmask 254976
    %v25 = vsel %vm24, %v23, -inf
    %26 = vmax.xlane.f32.xlu0 %v25
    %v27 = vpop.xlane.xlu0 %26
    %v28 = vsel %vm18, %v27, 0.0
    %v29 = vsel %vm24, %v28, 0.0
    %v30 = vrot.slane %v29, 4
    %v31 = vadd.f32 %v29, %v30
    %v32 = vrot.slane %v31, 2
    %v33 = vadd.f32 %v31, %v32
    %v34 = vrot.slane %v33, 1
    %v35 = vadd.f32 %v33, %v34
    %v36 = vsub.f32 %v9, %v35
    %v37 = vmul.f32 %v36, 1.442695
    %v38 = vpow.pop %v37
    %v39 = vlaneseq
    %v40 = vshrl.u32 %v39, 7
    %v41 = vsub.s32 0, %v40
    %v42 = vrot.slane %v38, %v41
    %v43 = vsel %vm18, %v42, 0.0
    %v44 = vsel %vm24, %v43, 0.0
    %45 = vadd.xlane.f32.xlu0 %v44
    %v46 = vpop.xlane.xlu0 %45
    %v47 = vsel %vm18, %v46, 0.0
    %v48 = vsel %vm24, %v47, 0.0
    %v49 = vrot.slane %v48, 4
    %v50 = vadd.f32 %v48, %v49
    %v51 = vrot.slane %v50, 2
    %v52 = vadd.f32 %v50, %v51
    %v53 = vrot.slane %v52, 1
    %v54 = vadd.f32 %v52, %v53
    %v55 = vrcp.pop %v54
    %v56 = vmul.f32 %v38, %v55
    %v57 = vadd.s32 %v11, 8
    %v58 = vadd.s32 %v11, 16
    %v59 = vadd.s32 %v11, 24
    %vm60 = vcmp.eq.s32.totalorder %v11, %v13
    %vm61 = vcmp.eq.s32.totalorder %v57, %v13
    %vm62 = vcmp.eq.s32.totalorder %v58, %v13
    %vm63 = vcmp.eq.s32.totalorder %v59, %v13
    %v64 = vlaneseq
    %v65 = vshrl.u32 %v64, 7
    %v66 = vsub.s32 0, %v65
    %v67 = vrot.slane %v56, %v66
    %v68 = vsel %vm60, %v67, 0.0
    %v69 = vsel %vm61, %v67, 0.0
    %v70 = vsel %vm62, %v67, 0.0
    %v71 = vsel %vm63, %v67, 0.0
    %vm72 = vcmask 261120
    %v73 = vsel %vm72, %v68, 0.0
    %74 = vadd.xlane.f32.xlu0 %v73
    %v75 = vpop.xlane.xlu0 %74
    %v76 = vsel %vm72, %v69, 0.0
    %77 = vadd.xlane.f32.xlu0 %v76
    %v78 = vpop.xlane.xlu0 %77
    %v79 = vsel %vm72, %v70, 0.0
    %80 = vadd.xlane.f32.xlu0 %v79
    %v81 = vpop.xlane.xlu0 %80
    %v82 = vsel %vm72, %v71, 0.0
    %83 = vadd.xlane.f32.xlu0 %v82
    %v84 = vpop.xlane.xlu0 %83
    %v85 = vlaneseq
    %v86 = vshrl.u32 %v85, 7
    %v87 = vsub.s32 1, %v86
    %v88 = vrot.slane %v9, %v87
    %v89 = vsel %vm60, %v88, 0.0
    %v90 = vsel %vm61, %v88, 0.0
    %v91 = vsel %vm62, %v88, 0.0
    %v92 = vsel %vm63, %v88, 0.0
    %v93 = vsel %vm72, %v89, 0.0
    %94 = vadd.xlane.f32.xlu0 %v93
    %v95 = vpop.xlane.xlu0 %94
    %v96 = vsel %vm72, %v90, 0.0
    %97 = vadd.xlane.f32.xlu0 %v96
    %v98 = vpop.xlane.xlu0 %97
    %v99 = vsel %vm72, %v91, 0.0
    %100 = vadd.xlane.f32.xlu0 %v99
    %v101 = vpop.xlane.xlu0 %100
    %v102 = vsel %vm72, %v92, 0.0
    %103 = vadd.xlane.f32.xlu0 %v102
    %v104 = vpop.xlane.xlu0 %103
    %vm105 = vcmp.lt.f32.partialorder %v75, %v67
    %vm106 = vcmp.lt.f32.partialorder %v78, %v67
    %vm107 = vcmp.lt.f32.partialorder %v81, %v67
    %vm108 = vcmp.lt.f32.partialorder %v84, %v67
    %v109 = vsel %vm105, 1, 0
    %v110 = vsel %vm106, 1, 0
    %v111 = vsel %vm107, 1, 0
    %v112 = vsel %vm108, 1, 0
    %v113 = vcvt.s32.f32 %v109
    %v114 = vcvt.s32.f32 %v110
    %v115 = vcvt.s32.f32 %v111
    %v116 = vcvt.s32.f32 %v112
    %v117 = vsel %vm72, %v113, 0.0
    %v118 = vsel %vm72, %v114, 0.0
    %v119 = vadd.f32 %v117, %v118
    %v120 = vsel %vm72, %v115, 0.0
    %v121 = vadd.f32 %v119, %v120
    %v122 = vsel %vm72, %v116, 0.0
    %v123 = vadd.f32 %v121, %v122
    %v124 = vrot.slane %v123, 4
    %v125 = vadd.f32 %v123, %v124
    %v126 = vrot.slane %v125, 2
    %v127 = vadd.f32 %v125, %v126
    %v128 = vrot.slane %v127, 1
    %v129 = vadd.f32 %v127, %v128
    %vm130 = vcmp.lt.f32.partialorder %v95, %v88
    %vm131 = vcmp.lt.f32.partialorder %v98, %v88
    %vm132 = vcmp.lt.f32.partialorder %v101, %v88
    %vm133 = vcmp.lt.f32.partialorder %v104, %v88
    %v134 = vsel %vm130, 1, 0
    %v135 = vsel %vm131, 1, 0
    %v136 = vsel %vm132, 1, 0
    %v137 = vsel %vm133, 1, 0
    %v138 = vcvt.s32.f32 %v134
    %v139 = vcvt.s32.f32 %v135
    %v140 = vcvt.s32.f32 %v136
    %v141 = vcvt.s32.f32 %v137
    %v142 = vsel %vm72, %v138, 0.0
    %v143 = vsel %vm72, %v139, 0.0
    %v144 = vadd.f32 %v142, %v143
    %v145 = vsel %vm72, %v140, 0.0
    %v146 = vadd.f32 %v144, %v145
    %v147 = vsel %vm72, %v141, 0.0
    %v148 = vadd.f32 %v146, %v147
    %v149 = vrot.slane %v148, 4
    %v150 = vadd.f32 %v148, %v149
    %v151 = vrot.slane %v150, 2
    %v152 = vadd.f32 %v150, %v151
    %v153 = vrot.slane %v152, 1
    %v154 = vadd.f32 %v152, %v153
    %v155 = vmul.f32 %v129, %v154
    %vm156 = vcmask 253952
    %v157 = vsel %vm156, %v155, 0.0
    %158 = vadd.xlane.f32.xlu0 %v157
    %v159 = vpop.xlane.xlu0 %158
    %v160 = vrot.slane %v159, 4
    %v161 = vadd.f32 %v159, %v160
    %v162 = vrot.slane %v161, 2
    %v163 = vadd.f32 %v161, %v162
    %v164 = vrot.slane %v163, 1
    %v165 = vadd.f32 %v163, %v164
    %s166 = vtos %v165
    %v167 = vmul.f32 %v129, %v129
    %v168 = vsel %vm156, %v167, 0.0
    %169 = vadd.xlane.f32.xlu0 %v168
    %v170 = vpop.xlane.xlu0 %169
    %v171 = vrot.slane %v170, 4
    %v172 = vadd.f32 %v170, %v171
    %v173 = vrot.slane %v172, 2
    %v174 = vadd.f32 %v172, %v173
    %v175 = vrot.slane %v174, 1
    %v176 = vadd.f32 %v174, %v175
    %s177 = vtos %v176
    %v178 = vmul.f32 %v154, %v154
    %v179 = vsel %vm156, %v178, 0.0
    %180 = vadd.xlane.f32.xlu0 %v179
    %v181 = vpop.xlane.xlu0 %180
    %v182 = vrot.slane %v181, 4
    %v183 = vadd.f32 %v181, %v182
    %v184 = vrot.slane %v183, 2
    %v185 = vadd.f32 %v183, %v184
    %v186 = vrot.slane %v185, 1
    %v187 = vadd.f32 %v185, %v186
    %s188 = vtos %v187
    %s189 = smul.f32 %s177, %s188
    %s190 = smax.f32 %s189, 1e-16
    %v191 = vstv %s190
    %v192 = vrsqrt.pop %v191
    %s193 = vtos %v192
    %s194 = smul.f32 %s166, %s193
    %s195 = ssub.f32 1.0, %s194
    %v196 = vsel %vm156, %v56, 0.0
    %197 = vadd.xlane.f32.xlu0 %v196
    %v198 = vpop.xlane.xlu0 %197
    %v199 = vrot.slane %v198, 4
    %v200 = vadd.f32 %v198, %v199
    %v201 = vrot.slane %v200, 2
    %v202 = vadd.f32 %v200, %v201
    %v203 = vrot.slane %v202, 1
    %v204 = vadd.f32 %v202, %v203
    %s205 = vtos %v204
    %s206 = smul.f32 %s205, 0.03125
    %v207 = vstv %s206
    %v208 = vsub.f32 %v56, %v207
    %v210 = vrot.slane %v9, 1
    %v212 = vsel %vm156, %v210, 0.0
    %213 = vadd.xlane.f32.xlu0 %v212
    %v214 = vpop.xlane.xlu0 %213
    %v215 = vrot.slane %v214, 4
    %v216 = vadd.f32 %v214, %v215
    %v217 = vrot.slane %v216, 2
    %v218 = vadd.f32 %v216, %v217
    %v219 = vrot.slane %v218, 1
    %v220 = vadd.f32 %v218, %v219
    %s221 = vtos %v220
    %s222 = smul.f32 %s221, 0.03125
    %v223 = vstv %s222
    %v224 = vsub.f32 %v9, %v223
    %v226 = vrot.slane %v224, 1
    %v228 = vmul.f32 %v208, %v226
    %v229 = vsel %vm156, %v228, 0.0
    %230 = vadd.xlane.f32.xlu0 %v229
    %v231 = vpop.xlane.xlu0 %230
    %v232 = vrot.slane %v231, 4
    %v233 = vadd.f32 %v231, %v232
    %v234 = vrot.slane %v233, 2
    %v235 = vadd.f32 %v233, %v234
    %v236 = vrot.slane %v235, 1
    %v237 = vadd.f32 %v235, %v236
    %s238 = vtos %v237
    %v239 = vmul.f32 %v208, %v208
    %v240 = vsel %vm156, %v239, 0.0
    %241 = vadd.xlane.f32.xlu0 %v240
    %v242 = vpop.xlane.xlu0 %241
    %v243 = vrot.slane %v242, 4
    %v244 = vadd.f32 %v242, %v243
    %v245 = vrot.slane %v244, 2
    %v246 = vadd.f32 %v244, %v245
    %v247 = vrot.slane %v246, 1
    %v248 = vadd.f32 %v246, %v247
    %s249 = vtos %v248
    %v250 = vmul.f32 %v224, %v224
    %v252 = vrot.slane %v250, 1
    %v254 = vsel %vm156, %v252, 0.0
    %255 = vadd.xlane.f32.xlu0 %v254
    %v256 = vpop.xlane.xlu0 %255
    %v257 = vrot.slane %v256, 4
    %v258 = vadd.f32 %v256, %v257
    %v259 = vrot.slane %v258, 2
    %v260 = vadd.f32 %v258, %v259
    %v261 = vrot.slane %v260, 1
    %v262 = vadd.f32 %v260, %v261
    %s263 = vtos %v262
    %s264 = smul.f32 %s249, %s263
    %s265 = smax.f32 %s264, 1e-16
    %v266 = vstv %s265
    %v267 = vrsqrt.pop %v266
    %s268 = vtos %v267
    %s269 = smul.f32 %s238, %s268
    %s270 = ssub.f32 1.0, %s269
    %vm271 = vcmask 254977
    %v272 = vsel %vm271, %v9, -inf
    %273 = vmax.xlane.f32.xlu0 %v272
    %v274 = vpop.xlane.xlu0 %273
    %v275 = vrot.slane %v274, 4
    %v276 = vmax.f32 %v274, %v275
    %v277 = vrot.slane %v276, 2
    %v278 = vmax.f32 %v276, %v277
    %v279 = vrot.slane %v278, 1
    %v280 = vmax.f32 %v278, %v279
    %s281 = vtos %v280
    %v282 = vstv %s281
    %v283 = vsub.f32 %v9, %v282
    %v284 = vmul.f32 %v283, 1.442695
    %v285 = vpow.pop %v284
    %v287 = vrot.slane %v285, 1
    %v289 = vsel %vm156, %v287, 0.0
    %290 = vadd.xlane.f32.xlu0 %v289
    %v291 = vpop.xlane.xlu0 %290
    %v292 = vrot.slane %v291, 4
    %v293 = vadd.f32 %v291, %v292
    %v294 = vrot.slane %v293, 2
    %v295 = vadd.f32 %v293, %v294
    %v296 = vrot.slane %v295, 1
    %v297 = vadd.f32 %v295, %v296
    %s298 = vtos %v297
    %v299 = vstv %s298
    %v300 = vrcp.pop %v299
    %v301 = vmul.f32 %v285, %v300
    %v302 = vmul.f32 %v301, %v210
    %v304 = vrot.slane %v302, 1
    %v306 = vsel %vm156, %v304, 0.0
    %307 = vadd.xlane.f32.xlu0 %v306
    %v308 = vpop.xlane.xlu0 %307
    %v309 = vrot.slane %v308, 4
    %v310 = vadd.f32 %v308, %v309
    %v311 = vrot.slane %v310, 2
    %v312 = vadd.f32 %v310, %v311
    %v313 = vrot.slane %v312, 1
    %v314 = vadd.f32 %v312, %v313
    %s315 = vtos %v314
    %v316 = vsub.f32 31.0, %v154
    %v317 = vadd.f32 %v316, 2.0
    %v318 = vlog2.pop %v317
    %v319 = vmul.f32 %v318, 0.6931472
    %v320 = vrcp.pop %v319
    %v321 = vmul.f32 0.6931472, %v320
    %v322 = vmul.f32 %v301, %v321
    %v324 = vrot.slane %v322, 1
    %v326 = vsel %vm156, %v324, 0.0
    %327 = vadd.xlane.f32.xlu0 %v326
    %v328 = vpop.xlane.xlu0 %327
    %v329 = vrot.slane %v328, 4
    %v330 = vadd.f32 %v328, %v329
    %v331 = vrot.slane %v330, 2
    %v332 = vadd.f32 %v330, %v331
    %v333 = vrot.slane %v332, 1
    %v334 = vadd.f32 %v332, %v333
    %s335 = vtos %v334
    %v336 = vstv %s335
    %v337 = vrcp.pop %v336
    %s338 = vtos %v337
    %s339 = smul.f32 %s315, %s338
    %s340 = ssub.f32 1.0, %s339
    %v341 = vsub.f32 %v56, %v210
    %v342 = vmul.f32 %v341, %v341
    %v343 = vsel %vm156, %v342, 0.0
    %344 = vadd.xlane.f32.xlu0 %v343
    %v345 = vpop.xlane.xlu0 %344
    %v346 = vrot.slane %v345, 4
    %v347 = vadd.f32 %v345, %v346
    %v348 = vrot.slane %v347, 2
    %v349 = vadd.f32 %v347, %v348
    %v350 = vrot.slane %v349, 1
    %v351 = vadd.f32 %v349, %v350
    %s352 = vtos %v351
    %s353 = smul.f32 %s352, 0.03125
    %v354 = vstv %s353
    %v355 = vrsqrt.pop %v354
    %v356 = vmul.f32 %v354, %v355
    %vm357 = vcmp.eq.f32.partialorder %v354, inf
    %v358 = vsel %vm357, %v354, %v356
    %vm359 = vcmp.eq.f32.partialorder %v354, 0.0
    %v360 = vand.u32 %v354, 2147483648
    %v361 = vsel %vm359, %v360, %v358
    %s362 = vtos %v361
    %s363 = sadd.f32 %s195, %s270
    %s364 = sadd.f32 %s363, %s340
    %s365 = sadd.f32 %s364, %s362
    %s366 = smul.f32 %s365, 0.25
    %s367 = smul.u32 0, 128
    %s368 = scalar_lea.smem [#allocation2], %s367
    %369 = sst [smem:[%s368]] %s366
    // Predicated region
    $region6: #{tpu_custom_call.1} parent=1 // pred_check
      _
    $region7: #{tpu_custom_call.1} parent=1 // pred_check_branch
      %371 = sbr.rel (0) target = $region9
    $region8: #{tpu_custom_call.1} parent=1 // pred_region
      %s373 = ssub.s32 16, 16
      %374 = vsyncadd [#allocation3], %s373
      %377 = dma.smem_to_hbm [#allocation2], 16, %s1, [#allocation3]
    $region9: #{tpu_custom_call.1} parent=1 // pred_fallthru
      _
    // Predicated region
    $region10: #{tpu_custom_call.1} parent=1 // pred_check
      _
    $region11: #{tpu_custom_call.1} parent=1 // pred_check_branch
      %379 = sbr.rel (0) target = $region13
    $region12: #{tpu_custom_call.1} parent=1 // pred_region
      %380 = dma.done [#allocation3], 16
    $region13: #{tpu_custom_call.1} parent=1 // pred_fallthru
      _
    %381 = sfence
    %382 = vsyncpa [#allocation3], 1

</llo_original>
